<compile_context>
chip_gen: v6e
topology: v6e:2x2x1
jax: 0.10.0
libtpu: 0.0.40
codegen_flags: <defaults>
</compile_context>

<pallas_src>
import functools

import jax
import jax.numpy as jnp
from jax.experimental import pallas as pl
from jax.experimental.pallas import tpu as pltpu

# bf16 MXU operands / bf16 activation storage only on a real TPU backend; the
# CPU (interpret) dot thunk does not support BF16 x BF16 = F32.
_ON_TPU = jax.default_backend() == "tpu"
_MM_DTYPE = jnp.bfloat16 if _ON_TPU else jnp.float32

LANE = 128
NEG_INF = -1e30


def _round_up(x, m):
    return (x + m - 1) // m * m


def _pad_and_tiles(n):
    """Padded node count and (dst-role tile, src-role tile) for one node type."""
    n_p = _round_up(max(int(n), 1), 128)
    if n_p <= 128:
        return 128, 128, 128
    if n_p <= 256:
        return 256, 256, 256
    # big graphs: pad to a multiple of 512 so 256 (dst) / 512 (src) tiles divide it
    n_p = _round_up(n_p, 512)
    return n_p, 256, 512


# ----------------------------------------------------------------------------
# Kernel 1: one-shot projection pass per node type.
#   h      = x @ W                      [N, H*Cp]  (message features)
#   e_src  = (h @ A_pack)^T             [H, N]     (src-side attention logits)
#   e_dst  = x @ (W_dst @ A_dst_pack)   [N, H]     (dst-side attention logits
#                                                   for the OTHER direction)
# ----------------------------------------------------------------------------
def _project_kernel(x_ref, w_ref, a_ref, wa_ref, h_ref, e_src_ref, e_dst_ref):
    x = x_ref[...]
    h = jnp.dot(x, w_ref[...], preferred_element_type=jnp.float32)        # [Tn, W]
    h_ref[...] = h.astype(h_ref.dtype)
    e_src = jnp.dot(h.astype(a_ref.dtype), a_ref[...],
                    preferred_element_type=jnp.float32)                    # [Tn, H]
    e_src_ref[...] = e_src.T                                               # [H, Tn]
    e_dst_ref[...] = jnp.dot(x, wa_ref[...],
                             preferred_element_type=jnp.float32)           # [Tn, H]


def project(x, w, a_pack, wa, *, heads, tile_n):
    n_p, f_p = x.shape
    width = w.shape[1]
    return pl.pallas_call(
        _project_kernel,
        out_shape=(
            jax.ShapeDtypeStruct((n_p, width), _MM_DTYPE),     # h
            jax.ShapeDtypeStruct((heads, n_p), jnp.float32),   # e_src (transposed)
            jax.ShapeDtypeStruct((n_p, heads), jnp.float32),   # e_dst
        ),
        grid=(n_p // tile_n,),
        in_specs=[
            pl.BlockSpec((tile_n, f_p), lambda i: (i, 0)),     # x tile
            pl.BlockSpec((f_p, width), lambda i: (0, 0)),      # W (resident)
            pl.BlockSpec((width, heads), lambda i: (0, 0)),    # packed a_src
            pl.BlockSpec((f_p, heads), lambda i: (0, 0)),      # folded W_dst@a_dst
        ],
        out_specs=(
            pl.BlockSpec((tile_n, width), lambda i: (i, 0)),
            pl.BlockSpec((heads, tile_n), lambda i: (0, i)),
            pl.BlockSpec((tile_n, heads), lambda i: (i, 0)),
        ),
        compiler_params=pltpu.CompilerParams(dimension_semantics=("parallel",)),
    )(x, w, a_pack, wa)


# ----------------------------------------------------------------------------
# Kernel 2: masked-softmax aggregation over src tiles (online softmax).
#   grid = (num_dst_tiles [parallel], num_src_tiles [arbitrary/reduction])
# ----------------------------------------------------------------------------
def _gat_agg_kernel(counts_ref, h_src_ref, e_src_ref, e_dst_ref, bias_ref,
                    adj_ref, out_ref, acc_ref, m_ref, l_ref,
                    *, heads, cp, negative_slope, apply_elu):
    d_idx = pl.program_id(0)
    s_idx = pl.program_id(1)
    n_s = pl.num_programs(1)

    @pl.when(s_idx == 0)
    def _init():
        m_ref[...] = jnp.full_like(m_ref, NEG_INF)
        l_ref[...] = jnp.zeros_like(l_ref)
        acc_ref[...] = jnp.zeros_like(acc_ref)

    # Block-sparse skip: only tiles that actually contain edges do any work.
    @pl.when(counts_ref[d_idx * n_s + s_idx] > 0)
    def _body():
        adj = adj_ref[...] != 0                           # [Td, Ts] bool (no f32 mask)
        h_src = h_src_ref[...]                            # [Ts, H*Cp]
        e_src = e_src_ref[...]                            # [H, Ts]  f32
        e_dst = e_dst_ref[...]                            # [Td, H]  f32
        for h in range(heads):
            sl = slice(h * cp, (h + 1) * cp)              # 128-aligned per-head slice
            logit = e_dst[:, h:h + 1] + e_src[h:h + 1, :]             # [Td, Ts]
            logit = jnp.maximum(logit, negative_slope * logit)        # LeakyReLU
            logit = jnp.where(adj, logit, NEG_INF)        # mask before the running max
            m_old = m_ref[:, h:h + 1]
            m_new = jnp.maximum(m_old, jnp.max(logit, axis=-1, keepdims=True))
            alpha = jnp.exp(m_old - m_new)
            p = jnp.where(adj, jnp.exp(logit - m_new), 0.0)           # exact zero off-graph
            l_ref[:, h:h + 1] = alpha * l_ref[:, h:h + 1] + jnp.sum(
                p, axis=-1, keepdims=True)
            m_ref[:, h:h + 1] = m_new
            acc_ref[:, sl] = alpha * acc_ref[:, sl] + jnp.dot(
                p.astype(h_src.dtype), h_src[:, sl],
                preferred_element_type=jnp.float32)                   # [Td, Cp]

    @pl.when(s_idx == n_s - 1)
    def _finalize():
        l = l_ref[...]
        inv = 1.0 / jnp.where(l > 0.0, l, 1.0)            # nodes w/o neighbors -> bias only
        acc = acc_ref[...]
        parts = [acc[:, h * cp:(h + 1) * cp] * inv[:, h:h + 1] for h in range(heads)]
        res = parts[0] if heads == 1 else jnp.concatenate(parts, axis=-1)
        res = res + bias_ref[...]
        if apply_elu:
            # TODO(synk): switch to expm1 for better small-x precision once it has a
            #             guaranteed Mosaic lowering.
            res = jnp.where(res > 0, res, jnp.exp(res) - 1.0)
        out_ref[...] = res.astype(out_ref.dtype)


def gat_aggregate(counts, h_src, e_src_t, e_dst, bias, adj, *, heads, cp,
                  apply_elu, tile_d, tile_s, out_dtype):
    nd_p, ns_p = adj.shape
    width = heads * cp
    grid = (nd_p // tile_d, ns_p // tile_s)
    kernel = functools.partial(_gat_agg_kernel, heads=heads, cp=cp,
                               negative_slope=0.2, apply_elu=apply_elu)
    return pl.pallas_call(
        kernel,
        out_shape=jax.ShapeDtypeStruct((nd_p, width), out_dtype),
        grid_spec=pltpu.PrefetchScalarGridSpec(
            num_scalar_prefetch=1,
            grid=grid,
            in_specs=[
                pl.BlockSpec((tile_s, width), lambda d, s, c: (s, 0)),  # h_src tile
                pl.BlockSpec((heads, tile_s), lambda d, s, c: (0, s)),  # e_src (transposed)
                pl.BlockSpec((tile_d, heads), lambda d, s, c: (d, 0)),  # e_dst
                pl.BlockSpec((1, width), lambda d, s, c: (0, 0)),       # bias
                pl.BlockSpec((tile_d, tile_s), lambda d, s, c: (d, s)), # int8 adjacency
            ],
            out_specs=pl.BlockSpec((tile_d, width), lambda d, s, c: (d, 0)),
            scratch_shapes=[
                pltpu.VMEM((tile_d, width), jnp.float32),   # acc
                pltpu.VMEM((tile_d, heads), jnp.float32),   # running max
                pltpu.VMEM((tile_d, heads), jnp.float32),   # running denom
            ]),
        # TODO(synk): on v7x consider pltpu.CORE_PARALLEL on the dst axis and
        #             pl.Buffered(3) on the h_src/adj specs if DMA is exposed.
        compiler_params=pltpu.CompilerParams(
            dimension_semantics=("parallel", "arbitrary")),
    )(counts, h_src, e_src_t, e_dst, bias, adj)


def _tile_counts(adj, tile_d, tile_s):
    """Per-(dst_tile, src_tile) edge counts, flattened for SMEM scalar prefetch."""
    nd, ns = adj.shape
    c = adj.astype(jnp.int32).reshape(nd // tile_d, tile_d,
                                      ns // tile_s, tile_s).sum(axis=(1, 3))
    return c.reshape(-1)


# ----------------------------------------------------------------------------
# Parameter init (glorot-uniform, padded / per-head-packed layout).
# ----------------------------------------------------------------------------
def _glorot(key, shape):
    fan_in, fan_out = shape
    lim = jnp.sqrt(6.0 / (fan_in + fan_out))
    return jax.random.uniform(key, shape, jnp.float32, -lim, lim)


def _pack_attention(a):
    """[H, Cp] attention vectors -> [H*Cp, H] so e = h_proj @ A is one matmul."""
    h, cp = a.shape
    out = jnp.zeros((h * cp, h), jnp.float32)
    for i in range(h):
        out = out.at[i * cp:(i + 1) * cp, i].set(a[i])
    return out


def _init_gat_params(key, in_src_p, in_dst_p, heads, c_real, cp):
    width = heads * cp
    k = jax.random.split(key, 4)
    # zero the padded per-head channels so they stay exactly 0 through the net
    col_mask = ((jnp.arange(width) % cp) < c_real).astype(jnp.float32)
    ch_mask = (jnp.arange(cp) < c_real).astype(jnp.float32)
    w_src = _glorot(k[0], (in_src_p, width)) * col_mask[None, :]
    w_dst = _glorot(k[1], (in_dst_p, width)) * col_mask[None, :]
    a_src = _glorot(k[2], (heads, cp)) * ch_mask[None, :]
    a_dst = _glorot(k[3], (heads, cp)) * ch_mask[None, :]
    bias = jnp.zeros((1, width), jnp.float32)
    return (w_src, w_dst, _pack_attention(a_src), _pack_attention(a_dst), bias)


# ----------------------------------------------------------------------------
# HeteroGAE (forward == encoder) with Pallas kernels on the hot path.
# ----------------------------------------------------------------------------
class HeteroGAEPallas:
    def __init__(self, key, metadata, source_node, rel, dest_node,
                 encoder_num_layers, encoder_hidden_channels, encoder_num_heads,
                 encoder_dropouts, encoder_add_self_loops, encoder_shared_weights,
                 final_dimension, in_channels):
        # TODO(synk): encoder_dropouts are inference no-ops; encoder_add_self_loops
        #             and encoder_shared_weights don't apply to this bipartite
        #             dense-mask GAT formulation.
        self._metadata = metadata
        self._source_node = source_node
        self._rel = rel
        self._dest_node = dest_node
        self.num_layers = encoder_num_layers
        self.final_dimension = final_dimension

        # per-layer (heads, real_out_channels, padded_out_channels)
        self.layer_cfg = []
        for layer in range(encoder_num_layers):
            if layer < encoder_num_layers - 1:
                h_l, c_l = encoder_num_heads, encoder_hidden_channels
            else:
                h_l, c_l = 1, final_dimension
            self.layer_cfg.append((h_l, c_l, _round_up(c_l, LANE)))

        dim_s = _round_up(in_channels[source_node], LANE)
        dim_d = _round_up(in_channels[dest_node], LANE)
        self.proj_src, self.proj_dst = [], []     # (W, a_src_pack, W_dst@a_dst) per layer
        self.bias_rel, self.bias_rev = [], []
        keys = jax.random.split(key, 2 * encoder_num_layers)
        mm = _MM_DTYPE
        for layer in range(encoder_num_layers):
            h_l, c_l, cp_l = self.layer_cfg[layer]
            # rel: source_node -> dest_node ; rev: dest_node -> source_node
            w_sr, w_dr, a_sr, a_dr, b_r = _init_gat_params(
                keys[2 * layer], dim_s, dim_d, h_l, c_l, cp_l)
            w_sv, w_dv, a_sv, a_dv, b_v = _init_gat_params(
                keys[2 * layer + 1], dim_d, dim_s, h_l, c_l, cp_l)
            # fold the dst-side attention projection into a tiny [F, H] matrix
            wa_s = w_dv @ a_dv          # source_node plays dst in the rev direction
            wa_d = w_dr @ a_dr          # dest_node plays dst in the rel direction
            self.proj_src.append((w_sr.astype(mm), a_sr.astype(mm), wa_s.astype(mm)))
            self.proj_dst.append((w_sv.astype(mm), a_sv.astype(mm), wa_d.astype(mm)))
            self.bias_rel.append(b_r)
            self.bias_rev.append(b_v)
            dim_s = dim_d = h_l * cp_l

    def forward(self, x, edge_index):
        src_x = jnp.asarray(x[self._source_node], jnp.float32)
        dst_x = jnp.asarray(x[self._dest_node], jnp.float32)
        ei = edge_index[(self._source_node, self._rel, self._dest_node)]
        n_s, f_s = src_x.shape
        n_d, f_d = dst_x.shape

        ns_p, td_s, ts_s = _pad_and_tiles(n_s)   # padded count + role tiles (src node)
        nd_p, td_d, ts_d = _pad_and_tiles(n_d)   # padded count + role tiles (dst node)
        fs_p = _round_up(f_s, LANE)
        fd_p = _round_up(f_d, LANE)

        # zero-padded node features (padded rows/cols are exactly 0 throughout)
        h_s = jnp.zeros((ns_p, fs_p), _MM_DTYPE).at[:n_s, :f_s].set(
            src_x.astype(_MM_DTYPE))
        h_d = jnp.zeros((nd_p, fd_p), _MM_DTYPE).at[:n_d, :f_d].set(
            dst_x.astype(_MM_DTYPE))

        # int8 adjacency adj[dst, src]; reverse direction uses a once-materialized
        # transpose (no per-step in-kernel transpose).
        # TODO(synk): duplicate edges collapse to one entry (multigraph inputs would
        #             be weighted differently by PyG's edge-wise softmax).
        # TODO(synk): bit-pack the adjacency along the src axis to cut DMA 8-32x on
        #             very large graphs.
        adj = jnp.zeros((nd_p, ns_p), jnp.int8).at[ei[1], ei[0]].set(1)
        adj_t = adj.T
        cnt_rel = _tile_counts(adj, td_d, ts_s)     # shared by every layer
        cnt_rev = _tile_counts(adj_t, td_s, ts_d)

        for layer in range(self.num_layers):
            h_l, _c_l, cp_l = self.layer_cfg[layer]
            last = layer == self.num_layers - 1
            out_dtype = jnp.float32 if last else _MM_DTYPE
            # one-shot projections (no per-dst-tile recompute)
            hp_s, es_s, ed_s = project(h_s, *self.proj_src[layer], heads=h_l,
                                       tile_n=min(512, ns_p))
            hp_d, es_d, ed_d = project(h_d, *self.proj_dst[layer], heads=h_l,
                                       tile_n=min(512, nd_p))
            new_d = gat_aggregate(cnt_rel, hp_s, es_s, ed_d, self.bias_rel[layer],
                                  adj, heads=h_l, cp=cp_l, apply_elu=not last,
                                  tile_d=td_d, tile_s=ts_s, out_dtype=out_dtype)
            new_s = gat_aggregate(cnt_rev, hp_d, es_d, ed_s, self.bias_rev[layer],
                                  adj_t, heads=h_l, cp=cp_l, apply_elu=not last,
                                  tile_d=td_s, tile_s=ts_d, out_dtype=out_dtype)
            h_s, h_d = new_s, new_d

        fd = self.final_dimension
        return {self._source_node: h_s[:n_s, :fd].astype(jnp.float32),
                self._dest_node: h_d[:n_d, :fd].astype(jnp.float32)}

    # encode == forward, as in the reference module
    def encode(self, x, edge_index):
        return self.forward(x, edge_index)


if __name__ == "__main__":
    key = jax.random.PRNGKey(0)
    k_xs, k_xd, k_e1, k_e2, k_param = jax.random.split(key, 5)

    source_node, rel, dest_node = "user", "rates", "item"
    N_SRC, N_DST = 16, 16
    F_SRC, F_DST = 8, 6
    N_EDGES = 40

    x = {
        source_node: jax.random.normal(k_xs, (N_SRC, F_SRC), jnp.float32),
        dest_node: jax.random.normal(k_xd, (N_DST, F_DST), jnp.float32),
    }
    src_idx = jax.random.randint(k_e1, (N_EDGES,), 0, N_SRC)
    dst_idx = jax.random.randint(k_e2, (N_EDGES,), 0, N_DST)
    edge_index = {(source_node, rel, dest_node): jnp.stack([src_idx, dst_idx])}

    metadata = ([source_node, dest_node],
                [(source_node, rel, dest_node),
                 (dest_node, "rev_" + rel, source_node)])

    model = HeteroGAEPallas(
        k_param,
        metadata=metadata,
        source_node=source_node,
        rel=rel,
        dest_node=dest_node,
        encoder_num_layers=2,
        encoder_hidden_channels=16,
        encoder_num_heads=2,
        encoder_dropouts=[0.0, 0.0],
        encoder_add_self_loops=False,
        encoder_shared_weights=False,
        final_dimension=8,
        in_channels={source_node: F_SRC, dest_node: F_DST},
    )

    z = model.forward(x, edge_index)
    jax.block_until_ready(z)
    assert z[source_node].shape == (N_SRC, 8)
    assert z[dest_node].shape == (N_DST, 8)
    assert bool(jnp.all(jnp.isfinite(z[source_node])))
    assert bool(jnp.all(jnp.isfinite(z[dest_node])))
    print("KERNEL_OK")
</pallas_src>

<mosaic_0001>
module attributes {stable_mosaic.version = 11 : i64} {
  func.func @_project_kernel(%arg0: i32, %arg1: memref<128x128xf32, #tpu.memory_space<vmem>>, %arg2: memref<128x256xf32, #tpu.memory_space<vmem>>, %arg3: memref<256x2xf32, #tpu.memory_space<vmem>>, %arg4: memref<128x2xf32, #tpu.memory_space<vmem>>, %arg5: memref<128x256xf32, #tpu.memory_space<vmem>>, %arg6: memref<2x128xf32, #tpu.memory_space<vmem>>, %arg7: memref<128x2xf32, #tpu.memory_space<vmem>>) attributes {dimension_semantics = [#tpu.dimension_semantics<parallel>], iteration_bounds = array<i64: 1>, scalar_prefetch = 0 : i64, scratch_operands = 0 : i64, tpu.core_type = #tpu.core_type<tc>, window_params = [{transform_indices = @transform_0, window_bounds = array<i64: 128, 128>}, {pipeline_mode = #tpu.pipeline_mode<synchronous>, transform_indices = @transform_1, window_bounds = array<i64: 128, 256>}, {pipeline_mode = #tpu.pipeline_mode<synchronous>, transform_indices = @transform_2, window_bounds = array<i64: 256, 2>}, {pipeline_mode = #tpu.pipeline_mode<synchronous>, transform_indices = @transform_3, window_bounds = array<i64: 128, 2>}, {transform_indices = @transform_4, window_bounds = array<i64: 128, 256>}, {transform_indices = @transform_5, window_bounds = array<i64: 2, 128>}, {transform_indices = @transform_6, window_bounds = array<i64: 128, 2>}]} {
    %c0 = arith.constant 0 : index
    %c0_0 = arith.constant 0 : index
    %0 = vector.load %arg1[%c0, %c0_0] : memref<128x128xf32, #tpu.memory_space<vmem>>, vector<128x128xf32>
    %c0_1 = arith.constant 0 : index
    %c0_2 = arith.constant 0 : index
    %1 = vector.load %arg2[%c0_1, %c0_2] : memref<128x256xf32, #tpu.memory_space<vmem>>, vector<128x256xf32>
    %cst = arith.constant dense<0.000000e+00> : vector<128x256xf32>
    %2 = tpu.matmul %0, %1, %cst {dimension_numbers = #tpu.dot_dimension_numbers<[1], [0], [0], [1], [0, 0, 1, 1], [], []>} : vector<128x128xf32>, vector<128x256xf32>, vector<128x256xf32> -> vector<128x256xf32>
    %c0_3 = arith.constant 0 : index
    %c0_4 = arith.constant 0 : index
    %3 = vector.load %arg5[%c0_3, %c0_4] : memref<128x256xf32, #tpu.memory_space<vmem>>, vector<128x256xf32>
    tpu.vector_store %arg5[%c0_3, %c0_4], %2 {strides = array<i32>} : memref<128x256xf32, #tpu.memory_space<vmem>>, vector<128x256xf32>,
    %c0_5 = arith.constant 0 : index
    %c0_6 = arith.constant 0 : index
    %4 = vector.load %arg3[%c0_5, %c0_6] : memref<256x2xf32, #tpu.memory_space<vmem>>, vector<256x2xf32>
    %cst_7 = arith.constant dense<0.000000e+00> : vector<128x2xf32>
    %5 = tpu.matmul %2, %4, %cst_7 {dimension_numbers = #tpu.dot_dimension_numbers<[1], [0], [0], [1], [0, 0, 1, 1], [], []>} : vector<128x256xf32>, vector<256x2xf32>, vector<128x2xf32> -> vector<128x2xf32>
    %6 = tpu.transpose %5, [1, 0] : vector<128x2xf32> -> vector<2x128xf32>
    %c0_8 = arith.constant 0 : index
    %c0_9 = arith.constant 0 : index
    %7 = vector.load %arg6[%c0_8, %c0_9] : memref<2x128xf32, #tpu.memory_space<vmem>>, vector<2x128xf32>
    tpu.vector_store %arg6[%c0_8, %c0_9], %6 {strides = array<i32>} : memref<2x128xf32, #tpu.memory_space<vmem>>, vector<2x128xf32>,
    %c0_10 = arith.constant 0 : index
    %c0_11 = arith.constant 0 : index
    %8 = vector.load %arg4[%c0_10, %c0_11] : memref<128x2xf32, #tpu.memory_space<vmem>>, vector<128x2xf32>
    %cst_12 = arith.constant dense<0.000000e+00> : vector<128x2xf32>
    %9 = tpu.matmul %0, %8, %cst_12 {dimension_numbers = #tpu.dot_dimension_numbers<[1], [0], [0], [1], [0, 0, 1, 1], [], []>} : vector<128x128xf32>, vector<128x2xf32>, vector<128x2xf32> -> vector<128x2xf32>
    %c0_13 = arith.constant 0 : index
    %c0_14 = arith.constant 0 : index
    %10 = vector.load %arg7[%c0_13, %c0_14] : memref<128x2xf32, #tpu.memory_space<vmem>>, vector<128x2xf32>
    tpu.vector_store %arg7[%c0_13, %c0_14], %9 {strides = array<i32>} : memref<128x2xf32, #tpu.memory_space<vmem>>, vector<128x2xf32>,
    return
  }
  func.func @transform_0(%arg0: i32) -> (i32, i32) {
    %c0_i32 = arith.constant 0 : i32
    %c0_i32_0 = arith.constant 0 : i32
    return %arg0, %c0_i32 : i32, i32
  }
  func.func @transform_1(%arg0: i32) -> (i32, i32) {
    %c0_i32 = arith.constant 0 : i32
    %c0_i32_0 = arith.constant 0 : i32
    %c0_i32_1 = arith.constant 0 : i32
    return %c0_i32, %c0_i32_0 : i32, i32
  }
  func.func @transform_2(%arg0: i32) -> (i32, i32) {
    %c0_i32 = arith.constant 0 : i32
    %c0_i32_0 = arith.constant 0 : i32
    %c0_i32_1 = arith.constant 0 : i32
    return %c0_i32, %c0_i32_0 : i32, i32
  }
  func.func @transform_3(%arg0: i32) -> (i32, i32) {
    %c0_i32 = arith.constant 0 : i32
    %c0_i32_0 = arith.constant 0 : i32
    %c0_i32_1 = arith.constant 0 : i32
    return %c0_i32, %c0_i32_0 : i32, i32
  }
  func.func @transform_4(%arg0: i32) -> (i32, i32) {
    %c0_i32 = arith.constant 0 : i32
    %c0_i32_0 = arith.constant 0 : i32
    return %arg0, %c0_i32 : i32, i32
  }
  func.func @transform_5(%arg0: i32) -> (i32, i32) {
    %c0_i32 = arith.constant 0 : i32
    %c0_i32_0 = arith.constant 0 : i32
    return %c0_i32, %arg0 : i32, i32
  }
  func.func @transform_6(%arg0: i32) -> (i32, i32) {
    %c0_i32 = arith.constant 0 : i32
    %c0_i32_0 = arith.constant 0 : i32
    return %arg0, %c0_i32 : i32, i32
  }
}

</mosaic_0001>

<llo_original>
// kernel: tpu_custom_call.1
$region0: #{tpu_custom_call.1}
  #allocation0 [shape = 'u32[]', space=smem, size = 0x4, offset = 0x4, fixed_abs, tag = 'smem constant byte address 0x4 - core index']
  #allocation1 [shape = 'u32[144,128]{1,0:T(1,128)}', space=vmem, size = 0x12000, scoped, tag = 'internal scratch']
  %s0 = inlined_call_operand.vmem [shape: f32[128,128], index: 0, kind: input, shape index: {}]
  %s1 = inlined_call_operand.vmem [shape: f32[128,256], index: 1, kind: input, shape index: {}]
  %s2 = inlined_call_operand.vmem [shape: f32[256,2], index: 2, kind: input, shape index: {}]
  %s3 = inlined_call_operand.vmem [shape: f32[128,2], index: 3, kind: input, shape index: {}]
  %s4 = inlined_call_operand.hbm [shape: f32[128,256], index: 4, kind: output, shape index: {0}]
  %s5 = inlined_call_operand.hbm [shape: f32[2,128], index: 5, kind: output, shape index: {1}]
  %s6 = inlined_call_operand.vmem [shape: f32[128,2], index: 6, kind: output, shape index: {2}]
  %7 = xla_tuple %s4, %s5, %s6
  %s8 = sld [smem:[#allocation0]]
  $region42: #{tpu_custom_call.1} parent=0
    _
  %s10 = ssub.s32 1, %s8
  %s11 = scalar_select 0, %s10, %s8
  $region1: #{tpu_custom_call.1} parent=0
    #allocation2 [shape = 'u8[131072]{0}', space=vmem, size = 0x20000, scoped, tag = 'output window, operand 0, single buffered']
    #allocation3 [shape = 's32[1]{0}', space=sflag, size = 0x4, scoped, tag = 'scoped memory for tpu_custom_call.1']
    #allocation4 [shape = 'u8[1024]{0}', space=vmem, size = 0x400, scoped, tag = 'output window, operand 1, single buffered']
    #allocation5 [shape = 's32[1]{0}', space=sflag, size = 0x4, scoped, tag = 'scoped memory for tpu_custom_call.1']
    %12 = vsyncpa [#allocation3], 0
    %13 = vsyncpa [#allocation5], 0
    // Predicated region
    $region2: #{tpu_custom_call.1} parent=1 // pred_check
      _
    $region3: #{tpu_custom_call.1} parent=1 // pred_check_branch
      %15 = sbr.rel (0) target = $region5
    $region4: #{tpu_custom_call.1} parent=1 // pred_region
      _
    $region5: #{tpu_custom_call.1} parent=1 // pred_fallthru
      _
    // Predicated region
    $region6: #{tpu_custom_call.1} parent=1 // pred_check
      _
    $region7: #{tpu_custom_call.1} parent=1 // pred_check_branch
      %17 = sbr.rel (0) target = $region9
    $region8: #{tpu_custom_call.1} parent=1 // pred_region
      _
    $region9: #{tpu_custom_call.1} parent=1 // pred_fallthru
      _
    // Predicated region
    $region10: #{tpu_custom_call.1} parent=1 // pred_check
      _
    $region11: #{tpu_custom_call.1} parent=1 // pred_check_branch
      %19 = sbr.rel (0) target = $region13
    $region12: #{tpu_custom_call.1} parent=1 // pred_region
      _
    $region13: #{tpu_custom_call.1} parent=1 // pred_fallthru
      _
    // Predicated region
    $region14: #{tpu_custom_call.1} parent=1 // pred_check
      _
    $region15: #{tpu_custom_call.1} parent=1 // pred_check_branch
      %21 = sbr.rel (0) target = $region17
    $region16: #{tpu_custom_call.1} parent=1 // pred_region
      _
    $region17: #{tpu_custom_call.1} parent=1 // pred_fallthru
      _
    %v22 = vld [vmem:[%s0] sm:$0xff]
    %v23 = vld [vmem:[%s0 + $0x8] sm:$0xff]
    %v24 = vld [vmem:[%s0 + $0x10] sm:$0xff]
    %v25 = vld [vmem:[%s0 + $0x18] sm:$0xff]
    %v26 = vld [vmem:[%s0 + $0x20] sm:$0xff]
    %v27 = vld [vmem:[%s0 + $0x28] sm:$0xff]
    %v28 = vld [vmem:[%s0 + $0x30] sm:$0xff]
    %v29 = vld [vmem:[%s0 + $0x38] sm:$0xff]
    %v30 = vld [vmem:[%s0 + $0x40] sm:$0xff]
    %v31 = vld [vmem:[%s0 + $0x48] sm:$0xff]
    %v32 = vld [vmem:[%s0 + $0x50] sm:$0xff]
    %v33 = vld [vmem:[%s0 + $0x58] sm:$0xff]
    %v34 = vld [vmem:[%s0 + $0x60] sm:$0xff]
    %v35 = vld [vmem:[%s0 + $0x68] sm:$0xff]
    %v36 = vld [vmem:[%s0 + $0x70] sm:$0xff]
    %v37 = vld [vmem:[%s0 + $0x78] sm:$0xff]
    %v38 = vld [vmem:[%s1] sm:$0xff]
    %v39 = vld [vmem:[%s1 + $0x8] sm:$0xff]
    %v40 = vld [vmem:[%s1 + $0x10] sm:$0xff]
    %v41 = vld [vmem:[%s1 + $0x18] sm:$0xff]
    %v42 = vld [vmem:[%s1 + $0x20] sm:$0xff]
    %v43 = vld [vmem:[%s1 + $0x28] sm:$0xff]
    %v44 = vld [vmem:[%s1 + $0x30] sm:$0xff]
    %v45 = vld [vmem:[%s1 + $0x38] sm:$0xff]
    %v46 = vld [vmem:[%s1 + $0x40] sm:$0xff]
    %v47 = vld [vmem:[%s1 + $0x48] sm:$0xff]
    %v48 = vld [vmem:[%s1 + $0x50] sm:$0xff]
    %v49 = vld [vmem:[%s1 + $0x58] sm:$0xff]
    %v50 = vld [vmem:[%s1 + $0x60] sm:$0xff]
    %v51 = vld [vmem:[%s1 + $0x68] sm:$0xff]
    %v52 = vld [vmem:[%s1 + $0x70] sm:$0xff]
    %v53 = vld [vmem:[%s1 + $0x78] sm:$0xff]
    %v54 = vld [vmem:[%s1 + $0x80] sm:$0xff]
    %v55 = vld [vmem:[%s1 + $0x88] sm:$0xff]
    %v56 = vld [vmem:[%s1 + $0x90] sm:$0xff]
    %v57 = vld [vmem:[%s1 + $0x98] sm:$0xff]
    %v58 = vld [vmem:[%s1 + $0xa0] sm:$0xff]
    %v59 = vld [vmem:[%s1 + $0xa8] sm:$0xff]
    %v60 = vld [vmem:[%s1 + $0xb0] sm:$0xff]
    %v61 = vld [vmem:[%s1 + $0xb8] sm:$0xff]
    %v62 = vld [vmem:[%s1 + $0xc0] sm:$0xff]
    %v63 = vld [vmem:[%s1 + $0xc8] sm:$0xff]
    %v64 = vld [vmem:[%s1 + $0xd0] sm:$0xff]
    %v65 = vld [vmem:[%s1 + $0xd8] sm:$0xff]
    %v66 = vld [vmem:[%s1 + $0xe0] sm:$0xff]
    %v67 = vld [vmem:[%s1 + $0xe8] sm:$0xff]
    %v68 = vld [vmem:[%s1 + $0xf0] sm:$0xff]
    %v69 = vld [vmem:[%s1 + $0xf8] sm:$0xff]
    %70 = vmatprep.subr.mxu0 %v69
    %71 = vmatpush1.msra.mxu0 %v68
    %72 = vmatprep.subr.mxu0 %v67
    %73 = vmatpush1.msra.mxu0 %v66
    %74 = vmatprep.subr.mxu0 %v65
    %75 = vmatpush1.msra.mxu0 %v64
    %76 = vmatprep.subr.mxu0 %v63
    %77 = vmatpush1.msra.mxu0 %v62
    %78 = vmatprep.subr.mxu0 %v61
    %79 = vmatpush1.msra.mxu0 %v60
    %80 = vmatprep.subr.mxu0 %v59
    %81 = vmatpush1.msra.mxu0 %v58
    %82 = vmatprep.subr.mxu0 %v57
    %83 = vmatpush1.msra.mxu0 %v56
    %84 = vmatprep.subr.mxu0 %v55
    %85 = vmatpush1.msra.mxu0 %v54
    %86 = vmatprep.subr.mxu0 %v53
    %87 = vmatpush1.msra.mxu0 %v52
    %88 = vmatprep.subr.mxu0 %v51
    %89 = vmatpush1.msra.mxu0 %v50
    %90 = vmatprep.subr.mxu0 %v49
    %91 = vmatpush1.msra.mxu0 %v48
    %92 = vmatprep.subr.mxu0 %v47
    %93 = vmatpush1.msra.mxu0 %v46
    %94 = vmatprep.subr.mxu0 %v45
    %95 = vmatpush1.msra.mxu0 %v44
    %96 = vmatprep.subr.mxu0 %v43
    %97 = vmatpush1.msra.mxu0 %v42
    %98 = vmatprep.subr.mxu0 %v41
    %99 = vmatpush1.msra.mxu0 %v40
    %100 = vmatprep.subr.mxu0 %v39
    %101 = vmatpush1.msra.mxu0 %v38
    %102 = vmatprep.subr.mxu0 0.0
    %103 = vmatpush2.msra.mxu0 0.0
    %104 = vmatprep.subr.mxu0 0.0
    %105 = vmatpush2.msra.mxu0 0.0
    %106 = vmatprep.subr.mxu0 0.0
    %107 = vmatpush2.msra.mxu0 0.0
    %108 = vmatprep.subr.mxu0 0.0
    %109 = vmatpush2.msra.mxu0 0.0
    %110 = vmatprep.subr.mxu0 0.0
    %111 = vmatpush2.msra.mxu0 0.0
    %112 = vmatprep.subr.mxu0 0.0
    %113 = vmatpush2.msra.mxu0 0.0
    %114 = vmatprep.subr.mxu0 0.0
    %115 = vmatpush2.msra.mxu0 0.0
    %116 = vmatprep.subr.mxu0 0.0
    %117 = vmatpush2.msra.mxu0 0.0
    %118 = vmatprep.subr.mxu0 0.0
    %119 = vmatpush2.msra.mxu0 0.0
    %120 = vmatprep.subr.mxu0 0.0
    %121 = vmatpush2.msra.mxu0 0.0
    %122 = vmatprep.subr.mxu0 0.0
    %123 = vmatpush2.msra.mxu0 0.0
    %124 = vmatprep.subr.mxu0 0.0
    %125 = vmatpush2.msra.mxu0 0.0
    %126 = vmatprep.subr.mxu0 0.0
    %127 = vmatpush2.msra.mxu0 0.0
    %128 = vmatprep.subr.mxu0 0.0
    %129 = vmatpush2.msra.mxu0 0.0
    %130 = vmatprep.subr.mxu0 0.0
    %131 = vmatpush2.msra.mxu0 0.0
    %132 = vmatprep.subr.mxu0 0.0
    %133 = vmatpush2.msra.mxu0 0.0
    %134 = vmatprep.mubr.f32.mxu0 0.0
    %135 = vmatmul.mubr.f32.gmra.mxu0 %v22
    %v136 = vpop.f32.mrf.mxu0
    %v137 = vadd.f32 0.0, %v136
    %v138 = vpop.f32.mrf.mxu0
    %v139 = vadd.f32 0.0, %v138
    %140 = vmatprep.mubr.f32.mxu0 0.0
    %141 = vmatmul.mubr.f32.gmra.mxu0 %v23
    %v142 = vpop.f32.mrf.mxu0
    %v143 = vadd.f32 0.0, %v142
    %v144 = vpop.f32.mrf.mxu0
    %v145 = vadd.f32 0.0, %v144
    %146 = vmatprep.mubr.f32.mxu0 0.0
    %147 = vmatmul.mubr.f32.gmra.mxu0 %v24
    %v148 = vpop.f32.mrf.mxu0
    %v149 = vadd.f32 0.0, %v148
    %v150 = vpop.f32.mrf.mxu0
    %v151 = vadd.f32 0.0, %v150
    %152 = vmatprep.mubr.f32.mxu0 0.0
    %153 = vmatmul.mubr.f32.gmra.mxu0 %v25
    %v154 = vpop.f32.mrf.mxu0
    %v155 = vadd.f32 0.0, %v154
    %v156 = vpop.f32.mrf.mxu0
    %v157 = vadd.f32 0.0, %v156
    %158 = vmatprep.mubr.f32.mxu0 0.0
    %159 = vmatmul.mubr.f32.gmra.mxu0 %v26
    %v160 = vpop.f32.mrf.mxu0
    %v161 = vadd.f32 0.0, %v160
    %v162 = vpop.f32.mrf.mxu0
    %v163 = vadd.f32 0.0, %v162
    %164 = vmatprep.mubr.f32.mxu0 0.0
    %165 = vmatmul.mubr.f32.gmra.mxu0 %v27
    %v166 = vpop.f32.mrf.mxu0
    %v167 = vadd.f32 0.0, %v166
    %v168 = vpop.f32.mrf.mxu0
    %v169 = vadd.f32 0.0, %v168
    %170 = vmatprep.mubr.f32.mxu0 0.0
    %171 = vmatmul.mubr.f32.gmra.mxu0 %v28
    %v172 = vpop.f32.mrf.mxu0
    %v173 = vadd.f32 0.0, %v172
    %v174 = vpop.f32.mrf.mxu0
    %v175 = vadd.f32 0.0, %v174
    %176 = vmatprep.mubr.f32.mxu0 0.0
    %177 = vmatmul.mubr.f32.gmra.mxu0 %v29
    %v178 = vpop.f32.mrf.mxu0
    %v179 = vadd.f32 0.0, %v178
    %v180 = vpop.f32.mrf.mxu0
    %v181 = vadd.f32 0.0, %v180
    %182 = vmatprep.mubr.f32.mxu0 0.0
    %183 = vmatmul.mubr.f32.gmra.mxu0 %v30
    %v184 = vpop.f32.mrf.mxu0
    %v185 = vadd.f32 0.0, %v184
    %v186 = vpop.f32.mrf.mxu0
    %v187 = vadd.f32 0.0, %v186
    %188 = vmatprep.mubr.f32.mxu0 0.0
    %189 = vmatmul.mubr.f32.gmra.mxu0 %v31
    %v190 = vpop.f32.mrf.mxu0
    %v191 = vadd.f32 0.0, %v190
    %v192 = vpop.f32.mrf.mxu0
    %v193 = vadd.f32 0.0, %v192
    %194 = vmatprep.mubr.f32.mxu0 0.0
    %195 = vmatmul.mubr.f32.gmra.mxu0 %v32
    %v196 = vpop.f32.mrf.mxu0
    %v197 = vadd.f32 0.0, %v196
    %v198 = vpop.f32.mrf.mxu0
    %v199 = vadd.f32 0.0, %v198
    %200 = vmatprep.mubr.f32.mxu0 0.0
    %201 = vmatmul.mubr.f32.gmra.mxu0 %v33
    %v202 = vpop.f32.mrf.mxu0
    %v203 = vadd.f32 0.0, %v202
    %v204 = vpop.f32.mrf.mxu0
    %v205 = vadd.f32 0.0, %v204
    %206 = vmatprep.mubr.f32.mxu0 0.0
    %207 = vmatmul.mubr.f32.gmra.mxu0 %v34
    %v208 = vpop.f32.mrf.mxu0
    %v209 = vadd.f32 0.0, %v208
    %v210 = vpop.f32.mrf.mxu0
    %v211 = vadd.f32 0.0, %v210
    %212 = vmatprep.mubr.f32.mxu0 0.0
    %213 = vmatmul.mubr.f32.gmra.mxu0 %v35
    %v214 = vpop.f32.mrf.mxu0
    %v215 = vadd.f32 0.0, %v214
    %v216 = vpop.f32.mrf.mxu0
    %v217 = vadd.f32 0.0, %v216
    %218 = vmatprep.mubr.f32.mxu0 0.0
    %219 = vmatmul.mubr.f32.gmra.mxu0 %v36
    %v220 = vpop.f32.mrf.mxu0
    %v221 = vadd.f32 0.0, %v220
    %v222 = vpop.f32.mrf.mxu0
    %v223 = vadd.f32 0.0, %v222
    %224 = vmatprep.mubr.f32.mxu0 0.0
    %225 = vmatmul.mubr.f32.gmra.mxu0 %v37
    %v226 = vpop.f32.mrf.mxu0
    %v227 = vadd.f32 0.0, %v226
    %v228 = vpop.f32.mrf.mxu0
    %v229 = vadd.f32 0.0, %v228
    %230 = vdwg.mxu0
    %231 = vst [vmem:[#allocation2] sm:$0xff] %v137
    %232 = vst [vmem:[#allocation2 + $0x8] sm:$0xff] %v139
    %233 = vst [vmem:[#allocation2 + $0x10] sm:$0xff] %v143
    %234 = vst [vmem:[#allocation2 + $0x18] sm:$0xff] %v145
    %235 = vst [vmem:[#allocation2 + $0x20] sm:$0xff] %v149
    %236 = vst [vmem:[#allocation2 + $0x28] sm:$0xff] %v151
    %237 = vst [vmem:[#allocation2 + $0x30] sm:$0xff] %v155
    %238 = vst [vmem:[#allocation2 + $0x38] sm:$0xff] %v157
    %239 = vst [vmem:[#allocation2 + $0x40] sm:$0xff] %v161
    %240 = vst [vmem:[#allocation2 + $0x48] sm:$0xff] %v163
    %241 = vst [vmem:[#allocation2 + $0x50] sm:$0xff] %v167
    %242 = vst [vmem:[#allocation2 + $0x58] sm:$0xff] %v169
    %243 = vst [vmem:[#allocation2 + $0x60] sm:$0xff] %v173
    %244 = vst [vmem:[#allocation2 + $0x68] sm:$0xff] %v175
    %245 = vst [vmem:[#allocation2 + $0x70] sm:$0xff] %v179
    %246 = vst [vmem:[#allocation2 + $0x78] sm:$0xff] %v181
    %247 = vst [vmem:[#allocation2 + $0x80] sm:$0xff] %v185
    %248 = vst [vmem:[#allocation2 + $0x88] sm:$0xff] %v187
    %249 = vst [vmem:[#allocation2 + $0x90] sm:$0xff] %v191
    %250 = vst [vmem:[#allocation2 + $0x98] sm:$0xff] %v193
    %251 = vst [vmem:[#allocation2 + $0xa0] sm:$0xff] %v197
    %252 = vst [vmem:[#allocation2 + $0xa8] sm:$0xff] %v199
    %253 = vst [vmem:[#allocation2 + $0xb0] sm:$0xff] %v203
    %254 = vst [vmem:[#allocation2 + $0xb8] sm:$0xff] %v205
    %255 = vst [vmem:[#allocation2 + $0xc0] sm:$0xff] %v209
    %256 = vst [vmem:[#allocation2 + $0xc8] sm:$0xff] %v211
    %257 = vst [vmem:[#allocation2 + $0xd0] sm:$0xff] %v215
    %258 = vst [vmem:[#allocation2 + $0xd8] sm:$0xff] %v217
    %259 = vst [vmem:[#allocation2 + $0xe0] sm:$0xff] %v221
    %260 = vst [vmem:[#allocation2 + $0xe8] sm:$0xff] %v223
    %261 = vst [vmem:[#allocation2 + $0xf0] sm:$0xff] %v227
    %262 = vst [vmem:[#allocation2 + $0xf8] sm:$0xff] %v229
    %v263 = vld [vmem:[%s2] sm:$0xff]
    %v264 = vld [vmem:[%s2 + $0x8] sm:$0xff]
    %v265 = vld [vmem:[%s2 + $0x10] sm:$0xff]
    %v266 = vld [vmem:[%s2 + $0x18] sm:$0xff]
    %v267 = vld [vmem:[%s2 + $0x20] sm:$0xff]
    %v268 = vld [vmem:[%s2 + $0x28] sm:$0xff]
    %v269 = vld [vmem:[%s2 + $0x30] sm:$0xff]
    %v270 = vld [vmem:[%s2 + $0x38] sm:$0xff]
    %v271 = vld [vmem:[%s2 + $0x40] sm:$0xff]
    %v272 = vld [vmem:[%s2 + $0x48] sm:$0xff]
    %v273 = vld [vmem:[%s2 + $0x50] sm:$0xff]
    %v274 = vld [vmem:[%s2 + $0x58] sm:$0xff]
    %v275 = vld [vmem:[%s2 + $0x60] sm:$0xff]
    %v276 = vld [vmem:[%s2 + $0x68] sm:$0xff]
    %v277 = vld [vmem:[%s2 + $0x70] sm:$0xff]
    %v278 = vld [vmem:[%s2 + $0x78] sm:$0xff]
    %v279 = vld [vmem:[%s2 + $0x80] sm:$0xff]
    %v280 = vld [vmem:[%s2 + $0x88] sm:$0xff]
    %v281 = vld [vmem:[%s2 + $0x90] sm:$0xff]
    %v282 = vld [vmem:[%s2 + $0x98] sm:$0xff]
    %v283 = vld [vmem:[%s2 + $0xa0] sm:$0xff]
    %v284 = vld [vmem:[%s2 + $0xa8] sm:$0xff]
    %v285 = vld [vmem:[%s2 + $0xb0] sm:$0xff]
    %v286 = vld [vmem:[%s2 + $0xb8] sm:$0xff]
    %v287 = vld [vmem:[%s2 + $0xc0] sm:$0xff]
    %v288 = vld [vmem:[%s2 + $0xc8] sm:$0xff]
    %v289 = vld [vmem:[%s2 + $0xd0] sm:$0xff]
    %v290 = vld [vmem:[%s2 + $0xd8] sm:$0xff]
    %v291 = vld [vmem:[%s2 + $0xe0] sm:$0xff]
    %v292 = vld [vmem:[%s2 + $0xe8] sm:$0xff]
    %v293 = vld [vmem:[%s2 + $0xf0] sm:$0xff]
    %v294 = vld [vmem:[%s2 + $0xf8] sm:$0xff]
    %295 = vmatprep.subr.mxu0 0.0
    %296 = vmatpush1.msra.mxu0 %v278
    %297 = vmatprep.subr.mxu0 0.0
    %298 = vmatpush1.msra.mxu0 %v277
    %299 = vmatprep.subr.mxu0 0.0
    %300 = vmatpush1.msra.mxu0 %v276
    %301 = vmatprep.subr.mxu0 0.0
    %302 = vmatpush1.msra.mxu0 %v275
    %303 = vmatprep.subr.mxu0 0.0
    %304 = vmatpush1.msra.mxu0 %v274
    %305 = vmatprep.subr.mxu0 0.0
    %306 = vmatpush1.msra.mxu0 %v273
    %307 = vmatprep.subr.mxu0 0.0
    %308 = vmatpush1.msra.mxu0 %v272
    %309 = vmatprep.subr.mxu0 0.0
    %310 = vmatpush1.msra.mxu0 %v271
    %311 = vmatprep.subr.mxu0 0.0
    %312 = vmatpush1.msra.mxu0 %v270
    %313 = vmatprep.subr.mxu0 0.0
    %314 = vmatpush1.msra.mxu0 %v269
    %315 = vmatprep.subr.mxu0 0.0
    %316 = vmatpush1.msra.mxu0 %v268
    %317 = vmatprep.subr.mxu0 0.0
    %318 = vmatpush1.msra.mxu0 %v267
    %319 = vmatprep.subr.mxu0 0.0
    %320 = vmatpush1.msra.mxu0 %v266
    %321 = vmatprep.subr.mxu0 0.0
    %322 = vmatpush1.msra.mxu0 %v265
    %323 = vmatprep.subr.mxu0 0.0
    %324 = vmatpush1.msra.mxu0 %v264
    %325 = vmatprep.subr.mxu0 0.0
    %326 = vmatpush1.msra.mxu0 %v263
    %327 = vmatprep.subr.mxu0 0.0
    %328 = vmatpush2.msra.mxu0 %v294
    %329 = vmatprep.subr.mxu0 0.0
    %330 = vmatpush2.msra.mxu0 %v293
    %331 = vmatprep.subr.mxu0 0.0
    %332 = vmatpush2.msra.mxu0 %v292
    %333 = vmatprep.subr.mxu0 0.0
    %334 = vmatpush2.msra.mxu0 %v291
    %335 = vmatprep.subr.mxu0 0.0
    %336 = vmatpush2.msra.mxu0 %v290
    %337 = vmatprep.subr.mxu0 0.0
    %338 = vmatpush2.msra.mxu0 %v289
    %339 = vmatprep.subr.mxu0 0.0
    %340 = vmatpush2.msra.mxu0 %v288
    %341 = vmatprep.subr.mxu0 0.0
    %342 = vmatpush2.msra.mxu0 %v287
    %343 = vmatprep.subr.mxu0 0.0
    %344 = vmatpush2.msra.mxu0 %v286
    %345 = vmatprep.subr.mxu0 0.0
    %346 = vmatpush2.msra.mxu0 %v285
    %347 = vmatprep.subr.mxu0 0.0
    %348 = vmatpush2.msra.mxu0 %v284
    %349 = vmatprep.subr.mxu0 0.0
    %350 = vmatpush2.msra.mxu0 %v283
    %351 = vmatprep.subr.mxu0 0.0
    %352 = vmatpush2.msra.mxu0 %v282
    %353 = vmatprep.subr.mxu0 0.0
    %354 = vmatpush2.msra.mxu0 %v281
    %355 = vmatprep.subr.mxu0 0.0
    %356 = vmatpush2.msra.mxu0 %v280
    %357 = vmatprep.subr.mxu0 0.0
    %358 = vmatpush2.msra.mxu0 %v279
    %359 = vmatprep.mubr.f32.mxu0 %v139
    %360 = vmatmul.mubr.f32.gmra.mxu0 %v137
    %v361 = vpop.f32.mrf.mxu0
    %v362 = vadd.f32 0.0, %v361
    %v363 = vpop.f32.mrf.mxu0
    %364 = vmatprep.mubr.f32.mxu0 %v145
    %365 = vmatmul.mubr.f32.gmra.mxu0 %v143
    %v366 = vpop.f32.mrf.mxu0
    %v367 = vadd.f32 0.0, %v366
    %v368 = vpop.f32.mrf.mxu0
    %369 = vmatprep.mubr.f32.mxu0 %v151
    %370 = vmatmul.mubr.f32.gmra.mxu0 %v149
    %v371 = vpop.f32.mrf.mxu0
    %v372 = vadd.f32 0.0, %v371
    %v373 = vpop.f32.mrf.mxu0
    %374 = vmatprep.mubr.f32.mxu0 %v157
    %375 = vmatmul.mubr.f32.gmra.mxu0 %v155
    %v376 = vpop.f32.mrf.mxu0
    %v377 = vadd.f32 0.0, %v376
    %v378 = vpop.f32.mrf.mxu0
    %379 = vmatprep.mubr.f32.mxu0 %v163
    %380 = vmatmul.mubr.f32.gmra.mxu0 %v161
    %v381 = vpop.f32.mrf.mxu0
    %v382 = vadd.f32 0.0, %v381
    %v383 = vpop.f32.mrf.mxu0
    %384 = vmatprep.mubr.f32.mxu0 %v169
    %385 = vmatmul.mubr.f32.gmra.mxu0 %v167
    %v386 = vpop.f32.mrf.mxu0
    %v387 = vadd.f32 0.0, %v386
    %v388 = vpop.f32.mrf.mxu0
    %389 = vmatprep.mubr.f32.mxu0 %v175
    %390 = vmatmul.mubr.f32.gmra.mxu0 %v173
    %v391 = vpop.f32.mrf.mxu0
    %v392 = vadd.f32 0.0, %v391
    %v393 = vpop.f32.mrf.mxu0
    %394 = vmatprep.mubr.f32.mxu0 %v181
    %395 = vmatmul.mubr.f32.gmra.mxu0 %v179
    %v396 = vpop.f32.mrf.mxu0
    %v397 = vadd.f32 0.0, %v396
    %v398 = vpop.f32.mrf.mxu0
    %399 = vmatprep.mubr.f32.mxu0 %v187
    %400 = vmatmul.mubr.f32.gmra.mxu0 %v185
    %v401 = vpop.f32.mrf.mxu0
    %v402 = vadd.f32 0.0, %v401
    %v403 = vpop.f32.mrf.mxu0
    %404 = vmatprep.mubr.f32.mxu0 %v193
    %405 = vmatmul.mubr.f32.gmra.mxu0 %v191
    %v406 = vpop.f32.mrf.mxu0
    %v407 = vadd.f32 0.0, %v406
    %v408 = vpop.f32.mrf.mxu0
    %409 = vmatprep.mubr.f32.mxu0 %v199
    %410 = vmatmul.mubr.f32.gmra.mxu0 %v197
    %v411 = vpop.f32.mrf.mxu0
    %v412 = vadd.f32 0.0, %v411
    %v413 = vpop.f32.mrf.mxu0
    %414 = vmatprep.mubr.f32.mxu0 %v205
    %415 = vmatmul.mubr.f32.gmra.mxu0 %v203
    %v416 = vpop.f32.mrf.mxu0
    %v417 = vadd.f32 0.0, %v416
    %v418 = vpop.f32.mrf.mxu0
    %419 = vmatprep.mubr.f32.mxu0 %v211
    %420 = vmatmul.mubr.f32.gmra.mxu0 %v209
    %v421 = vpop.f32.mrf.mxu0
    %v422 = vadd.f32 0.0, %v421
    %v423 = vpop.f32.mrf.mxu0
    %424 = vmatprep.mubr.f32.mxu0 %v217
    %425 = vmatmul.mubr.f32.gmra.mxu0 %v215
    %v426 = vpop.f32.mrf.mxu0
    %v427 = vadd.f32 0.0, %v426
    %v428 = vpop.f32.mrf.mxu0
    %429 = vmatprep.mubr.f32.mxu0 %v223
    %430 = vmatmul.mubr.f32.gmra.mxu0 %v221
    %v431 = vpop.f32.mrf.mxu0
    %v432 = vadd.f32 0.0, %v431
    %v433 = vpop.f32.mrf.mxu0
    %434 = vmatprep.mubr.f32.mxu0 %v229
    %435 = vmatmul.mubr.f32.gmra.mxu0 %v227
    %v436 = vpop.f32.mrf.mxu0
    %v437 = vadd.f32 0.0, %v436
    %v438 = vpop.f32.mrf.mxu0
    %439 = vdwg.mxu0
    %440 = vxpose.xlu0.b32.start [1/16] %v362, 128
    %441 = vxpose.xlu0.b32.cont [2/16] %v367, 128
    %442 = vxpose.xlu0.b32.cont [3/16] %v372, 128
    %443 = vxpose.xlu0.b32.cont [4/16] %v377, 128
    %444 = vxpose.xlu0.b32.cont [5/16] %v382, 128
    %445 = vxpose.xlu0.b32.cont [6/16] %v387, 128
    %446 = vxpose.xlu0.b32.cont [7/16] %v392, 128
    %447 = vxpose.xlu0.b32.cont [8/16] %v397, 128
    %448 = vxpose.xlu0.b32.cont [9/16] %v402, 128
    %449 = vxpose.xlu0.b32.cont [10/16] %v407, 128
    %450 = vxpose.xlu0.b32.cont [11/16] %v412, 128
    %451 = vxpose.xlu0.b32.cont [12/16] %v417, 128
    %452 = vxpose.xlu0.b32.cont [13/16] %v422, 128
    %453 = vxpose.xlu0.b32.cont [14/16] %v427, 128
    %454 = vxpose.xlu0.b32.cont [15/16] %v432, 128
    %455 = vxpose.xlu0.b32.end [16/16] %v437, 128
    %v456 = vpop.trf.xlu0
    %v457 = vpop.trf.xlu0
    %v458 = vpop.trf.xlu0
    %v459 = vpop.trf.xlu0
    %v460 = vpop.trf.xlu0
    %v461 = vpop.trf.xlu0
    %v462 = vpop.trf.xlu0
    %v463 = vpop.trf.xlu0
    %v464 = vpop.trf.xlu0
    %v465 = vpop.trf.xlu0
    %v466 = vpop.trf.xlu0
    %v467 = vpop.trf.xlu0
    %v468 = vpop.trf.xlu0
    %v469 = vpop.trf.xlu0
    %v470 = vpop.trf.xlu0
    %v471 = vpop.trf.xlu0
    %472 = vst [vmem:[#allocation4] sm:$0x3] %v456
    %v473 = vld [vmem:[%s3] sm:$0xff]
    %v474 = vld [vmem:[%s3 + $0x8] sm:$0xff]
    %v475 = vld [vmem:[%s3 + $0x10] sm:$0xff]
    %v476 = vld [vmem:[%s3 + $0x18] sm:$0xff]
    %v477 = vld [vmem:[%s3 + $0x20] sm:$0xff]
    %v478 = vld [vmem:[%s3 + $0x28] sm:$0xff]
    %v479 = vld [vmem:[%s3 + $0x30] sm:$0xff]
    %v480 = vld [vmem:[%s3 + $0x38] sm:$0xff]
    %v481 = vld [vmem:[%s3 + $0x40] sm:$0xff]
    %v482 = vld [vmem:[%s3 + $0x48] sm:$0xff]
    %v483 = vld [vmem:[%s3 + $0x50] sm:$0xff]
    %v484 = vld [vmem:[%s3 + $0x58] sm:$0xff]
    %v485 = vld [vmem:[%s3 + $0x60] sm:$0xff]
    %v486 = vld [vmem:[%s3 + $0x68] sm:$0xff]
    %v487 = vld [vmem:[%s3 + $0x70] sm:$0xff]
    %v488 = vld [vmem:[%s3 + $0x78] sm:$0xff]
    %489 = vmatprep.subr.mxu0 0.0
    %490 = vmatpush1.msra.mxu0 %v488
    %491 = vmatprep.subr.mxu0 0.0
    %492 = vmatpush1.msra.mxu0 %v487
    %493 = vmatprep.subr.mxu0 0.0
    %494 = vmatpush1.msra.mxu0 %v486
    %495 = vmatprep.subr.mxu0 0.0
    %496 = vmatpush1.msra.mxu0 %v485
    %497 = vmatprep.subr.mxu0 0.0
    %498 = vmatpush1.msra.mxu0 %v484
    %499 = vmatprep.subr.mxu0 0.0
    %500 = vmatpush1.msra.mxu0 %v483
    %501 = vmatprep.subr.mxu0 0.0
    %502 = vmatpush1.msra.mxu0 %v482
    %503 = vmatprep.subr.mxu0 0.0
    %504 = vmatpush1.msra.mxu0 %v481
    %505 = vmatprep.subr.mxu0 0.0
    %506 = vmatpush1.msra.mxu0 %v480
    %507 = vmatprep.subr.mxu0 0.0
    %508 = vmatpush1.msra.mxu0 %v479
    %509 = vmatprep.subr.mxu0 0.0
    %510 = vmatpush1.msra.mxu0 %v478
    %511 = vmatprep.subr.mxu0 0.0
    %512 = vmatpush1.msra.mxu0 %v477
    %513 = vmatprep.subr.mxu0 0.0
    %514 = vmatpush1.msra.mxu0 %v476
    %515 = vmatprep.subr.mxu0 0.0
    %516 = vmatpush1.msra.mxu0 %v475
    %517 = vmatprep.subr.mxu0 0.0
    %518 = vmatpush1.msra.mxu0 %v474
    %519 = vmatprep.subr.mxu0 0.0
    %520 = vmatpush1.msra.mxu0 %v473
    %521 = vmatprep.subr.mxu0 0.0
    %522 = vmatpush2.msra.mxu0 0.0
    %523 = vmatprep.subr.mxu0 0.0
    %524 = vmatpush2.msra.mxu0 0.0
    %525 = vmatprep.subr.mxu0 0.0
    %526 = vmatpush2.msra.mxu0 0.0
    %527 = vmatprep.subr.mxu0 0.0
    %528 = vmatpush2.msra.mxu0 0.0
    %529 = vmatprep.subr.mxu0 0.0
    %530 = vmatpush2.msra.mxu0 0.0
    %531 = vmatprep.subr.mxu0 0.0
    %532 = vmatpush2.msra.mxu0 0.0
    %533 = vmatprep.subr.mxu0 0.0
    %534 = vmatpush2.msra.mxu0 0.0
    %535 = vmatprep.subr.mxu0 0.0
    %536 = vmatpush2.msra.mxu0 0.0
    %537 = vmatprep.subr.mxu0 0.0
    %538 = vmatpush2.msra.mxu0 0.0
    %539 = vmatprep.subr.mxu0 0.0
    %540 = vmatpush2.msra.mxu0 0.0
    %541 = vmatprep.subr.mxu0 0.0
    %542 = vmatpush2.msra.mxu0 0.0
    %543 = vmatprep.subr.mxu0 0.0
    %544 = vmatpush2.msra.mxu0 0.0
    %545 = vmatprep.subr.mxu0 0.0
    %546 = vmatpush2.msra.mxu0 0.0
    %547 = vmatprep.subr.mxu0 0.0
    %548 = vmatpush2.msra.mxu0 0.0
    %549 = vmatprep.subr.mxu0 0.0
    %550 = vmatpush2.msra.mxu0 0.0
    %551 = vmatprep.subr.mxu0 0.0
    %552 = vmatpush2.msra.mxu0 0.0
    %553 = vmatprep.mubr.f32.mxu0 0.0
    %554 = vmatmul.mubr.f32.gmra.mxu0 %v22
    %v555 = vpop.f32.mrf.mxu0
    %v556 = vadd.f32 0.0, %v555
    %v557 = vpop.f32.mrf.mxu0
    %558 = vmatprep.mubr.f32.mxu0 0.0
    %559 = vmatmul.mubr.f32.gmra.mxu0 %v23
    %v560 = vpop.f32.mrf.mxu0
    %v561 = vadd.f32 0.0, %v560
    %v562 = vpop.f32.mrf.mxu0
    %563 = vmatprep.mubr.f32.mxu0 0.0
    %564 = vmatmul.mubr.f32.gmra.mxu0 %v24
    %v565 = vpop.f32.mrf.mxu0
    %v566 = vadd.f32 0.0, %v565
    %v567 = vpop.f32.mrf.mxu0
    %568 = vmatprep.mubr.f32.mxu0 0.0
    %569 = vmatmul.mubr.f32.gmra.mxu0 %v25
    %v570 = vpop.f32.mrf.mxu0
    %v571 = vadd.f32 0.0, %v570
    %v572 = vpop.f32.mrf.mxu0
    %573 = vmatprep.mubr.f32.mxu0 0.0
    %574 = vmatmul.mubr.f32.gmra.mxu0 %v26
    %v575 = vpop.f32.mrf.mxu0
    %v576 = vadd.f32 0.0, %v575
    %v577 = vpop.f32.mrf.mxu0
    %578 = vmatprep.mubr.f32.mxu0 0.0
    %579 = vmatmul.mubr.f32.gmra.mxu0 %v27
    %v580 = vpop.f32.mrf.mxu0
    %v581 = vadd.f32 0.0, %v580
    %v582 = vpop.f32.mrf.mxu0
    %583 = vmatprep.mubr.f32.mxu0 0.0
    %584 = vmatmul.mubr.f32.gmra.mxu0 %v28
    %v585 = vpop.f32.mrf.mxu0
    %v586 = vadd.f32 0.0, %v585
    %v587 = vpop.f32.mrf.mxu0
    %588 = vmatprep.mubr.f32.mxu0 0.0
    %589 = vmatmul.mubr.f32.gmra.mxu0 %v29
    %v590 = vpop.f32.mrf.mxu0
    %v591 = vadd.f32 0.0, %v590
    %v592 = vpop.f32.mrf.mxu0
    %593 = vmatprep.mubr.f32.mxu0 0.0
    %594 = vmatmul.mubr.f32.gmra.mxu0 %v30
    %v595 = vpop.f32.mrf.mxu0
    %v596 = vadd.f32 0.0, %v595
    %v597 = vpop.f32.mrf.mxu0
    %598 = vmatprep.mubr.f32.mxu0 0.0
    %599 = vmatmul.mubr.f32.gmra.mxu0 %v31
    %v600 = vpop.f32.mrf.mxu0
    %v601 = vadd.f32 0.0, %v600
    %v602 = vpop.f32.mrf.mxu0
    %603 = vmatprep.mubr.f32.mxu0 0.0
    %604 = vmatmul.mubr.f32.gmra.mxu0 %v32
    %v605 = vpop.f32.mrf.mxu0
    %v606 = vadd.f32 0.0, %v605
    %v607 = vpop.f32.mrf.mxu0
    %608 = vmatprep.mubr.f32.mxu0 0.0
    %609 = vmatmul.mubr.f32.gmra.mxu0 %v33
    %v610 = vpop.f32.mrf.mxu0
    %v611 = vadd.f32 0.0, %v610
    %v612 = vpop.f32.mrf.mxu0
    %613 = vmatprep.mubr.f32.mxu0 0.0
    %614 = vmatmul.mubr.f32.gmra.mxu0 %v34
    %v615 = vpop.f32.mrf.mxu0
    %v616 = vadd.f32 0.0, %v615
    %v617 = vpop.f32.mrf.mxu0
    %618 = vmatprep.mubr.f32.mxu0 0.0
    %619 = vmatmul.mubr.f32.gmra.mxu0 %v35
    %v620 = vpop.f32.mrf.mxu0
    %v621 = vadd.f32 0.0, %v620
    %v622 = vpop.f32.mrf.mxu0
    %623 = vmatprep.mubr.f32.mxu0 0.0
    %624 = vmatmul.mubr.f32.gmra.mxu0 %v36
    %v625 = vpop.f32.mrf.mxu0
    %v626 = vadd.f32 0.0, %v625
    %v627 = vpop.f32.mrf.mxu0
    %628 = vmatprep.mubr.f32.mxu0 0.0
    %629 = vmatmul.mubr.f32.gmra.mxu0 %v37
    %v630 = vpop.f32.mrf.mxu0
    %v631 = vadd.f32 0.0, %v630
    %v632 = vpop.f32.mrf.mxu0
    %633 = vdwg.mxu0
    %vm634 = vcmask 15360
    %635 = vst.msk [vmem:[%s6] sm:$0xff] %vm634, %v556
    %636 = vst.msk [vmem:[%s6 + $0x8] sm:$0xff] %vm634, %v561
    %637 = vst.msk [vmem:[%s6 + $0x10] sm:$0xff] %vm634, %v566
    %638 = vst.msk [vmem:[%s6 + $0x18] sm:$0xff] %vm634, %v571
    %639 = vst.msk [vmem:[%s6 + $0x20] sm:$0xff] %vm634, %v576
    %640 = vst.msk [vmem:[%s6 + $0x28] sm:$0xff] %vm634, %v581
    %641 = vst.msk [vmem:[%s6 + $0x30] sm:$0xff] %vm634, %v586
    %642 = vst.msk [vmem:[%s6 + $0x38] sm:$0xff] %vm634, %v591
    %643 = vst.msk [vmem:[%s6 + $0x40] sm:$0xff] %vm634, %v596
    %644 = vst.msk [vmem:[%s6 + $0x48] sm:$0xff] %vm634, %v601
    %645 = vst.msk [vmem:[%s6 + $0x50] sm:$0xff] %vm634, %v606
    %646 = vst.msk [vmem:[%s6 + $0x58] sm:$0xff] %vm634, %v611
    %647 = vst.msk [vmem:[%s6 + $0x60] sm:$0xff] %vm634, %v616
    %648 = vst.msk [vmem:[%s6 + $0x68] sm:$0xff] %vm634, %v621
    %649 = vst.msk [vmem:[%s6 + $0x70] sm:$0xff] %vm634, %v626
    %650 = vst.msk [vmem:[%s6 + $0x78] sm:$0xff] %vm634, %v631
    // Predicated region
    $region18: #{tpu_custom_call.1} parent=1 // pred_check
      _
    $region19: #{tpu_custom_call.1} parent=1 // pred_check_branch
      %652 = sbr.rel (0) target = $region21
    $region20: #{tpu_custom_call.1} parent=1 // pred_region
      %s654 = ssub.s32 4096, 4096
      %655 = vsyncadd [#allocation3], %s654
      %s656 = sshll.u32 [#allocation2], 4
      %s657 = int_to_ptr.vmem [resolvable:$true] %s656
      %662 = dma.vmem_to_hbm [thread:$0]  %s657, 4096, %s4, [#allocation3], 256, 256, 16
    $region21: #{tpu_custom_call.1} parent=1 // pred_fallthru
      _
    // Predicated region
    $region22: #{tpu_custom_call.1} parent=1 // pred_check
      _
    $region23: #{tpu_custom_call.1} parent=1 // pred_check_branch
      %664 = sbr.rel (0) target = $region25
    $region24: #{tpu_custom_call.1} parent=1 // pred_region
      %s666 = ssub.s32 32, 32
      %667 = vsyncadd [#allocation5], %s666
      %s669 = sshll.u32 [#allocation4], 4
      %s670 = int_to_ptr.vmem [resolvable:$true] %s669
      %672 = dma.vmem_to_hbm [thread:$0]  %s670, 32, %s5, [#allocation5]
    $region25: #{tpu_custom_call.1} parent=1 // pred_fallthru
      _
    // Predicated region
    $region26: #{tpu_custom_call.1} parent=1 // pred_check
      _
    $region27: #{tpu_custom_call.1} parent=1 // pred_check_branch
      %674 = sbr.rel (0) target = $region29
    $region28: #{tpu_custom_call.1} parent=1 // pred_region
      _
    $region29: #{tpu_custom_call.1} parent=1 // pred_fallthru
      _
    // Predicated region
    $region30: #{tpu_custom_call.1} parent=1 // pred_check
      _
    $region31: #{tpu_custom_call.1} parent=1 // pred_check_branch
      %676 = sbr.rel (0) target = $region33
    $region32: #{tpu_custom_call.1} parent=1 // pred_region
      %677 = dma.done [#allocation3], 4096
    $region33: #{tpu_custom_call.1} parent=1 // pred_fallthru
      _
    // Predicated region
    $region34: #{tpu_custom_call.1} parent=1 // pred_check
      _
    $region35: #{tpu_custom_call.1} parent=1 // pred_check_branch
      %679 = sbr.rel (0) target = $region37
    $region36: #{tpu_custom_call.1} parent=1 // pred_region
      %680 = dma.done [#allocation5], 32
    $region37: #{tpu_custom_call.1} parent=1 // pred_fallthru
      _
    // Predicated region
    $region38: #{tpu_custom_call.1} parent=1 // pred_check
      _
    $region39: #{tpu_custom_call.1} parent=1 // pred_check_branch
      %682 = sbr.rel (0) target = $region41
    $region40: #{tpu_custom_call.1} parent=1 // pred_region
      _
    $region41: #{tpu_custom_call.1} parent=1 // pred_fallthru
      _
    %683 = vsyncpa [#allocation3], 1
    %684 = vsyncpa [#allocation5], 1

</llo_original>
